<compile_context>
chip_gen: v6e
topology: v6e:2x2x1
jax: 0.10.0
libtpu: 0.0.40
codegen_flags: <defaults>
</compile_context>

<pallas_src>
import jax
import jax.numpy as jnp
from jax.experimental import pallas as pl
from jax.experimental.pallas import tpu as pltpu


def _sparse_ae_kernel(x_ref, w1_ref, b1_ref, w2_ref, b2_ref, o_ref, acc_ref):
    k = pl.program_id(2)

    @pl.when(k == 0)
    def _():
        acc_ref[...] = jnp.zeros_like(acc_ref)

    # Encoder partial: full n_input reduction against a column tile of W1.T.
    # Cast x to the weight dtype (bf16) in VMEM — no out-of-kernel convert.
    xb = x_ref[...].astype(w1_ref.dtype)
    h = jnp.dot(xb, w1_ref[...], preferred_element_type=jnp.float32)
    h = jnp.maximum(h + b1_ref[...], 0.0)          # bias + ReLU in f32

    # Decoder partial: accumulate over hidden tiles into the f32 VMEM scratch.
    acc_ref[...] += jnp.dot(h.astype(w2_ref.dtype), w2_ref[...],
                            preferred_element_type=jnp.float32)

    @pl.when(k == pl.num_programs(2) - 1)
    def _():
        y = acc_ref[...] + b2_ref[...]
        # sigmoid(y) = 1 / (1 + exp(-y)): exp on the EUP, approx reciprocal
        # keeps the divide off the VPU.
        o_ref[...] = pl.reciprocal(1.0 + jnp.exp(-y),
                                   approx=True).astype(o_ref.dtype)


def _round_up(v, m):
    return ((v + m - 1) // m) * m


def _pick_block_b(B, max_block=512):
    """Batch tile: favour MXU occupancy (one big tile) over forcing multiple
    grid steps; extra parallelism comes from the n_output axis instead."""
    if B <= max_block:
        return B                     # full-dim block: always layout-legal
    return max_block                 # multiple of 16; ragged last block is OK


def _pick_tile_n(n_output, num_b_blocks, cap=2048):
    """Output-column tile: multiple-of-128 divisor of n_output.  When the
    batch axis has a single grid step, prefer >=2 tiles so both TensorCores
    on v7x get parallel work."""
    min_tiles = 2 if num_b_blocks == 1 else 1
    best = None
    t = 128
    while t <= min(n_output, cap):
        if n_output % t == 0 and (n_output // t) >= min_tiles:
            best = t
        t += 128
    return best if best is not None else n_output


def _pick_tile_h(n_hidden, n_input, tile_n, wsz, budget_bytes=8 << 20):
    """Hidden (reduction) tile: multiple-of-128 divisor of n_hidden whose
    per-step W1/W2 blocks stay within a few MiB so weight DMA pipelines."""
    best = None
    t = 128
    while t <= n_hidden:
        if n_hidden % t == 0 and (n_input * t + t * tile_n) * wsz <= budget_bytes:
            best = t
        t += 128
    if best is None:
        best = 128 if n_hidden % 128 == 0 else n_hidden
    return best


def sparse_autoencoder_kl(x, w1_t, b1, w2_t, b2, *, block_b=None):
    """Forward pass of SparseAutoencoderKL.

    x    : [B, n_input]          (f32 or bf16; cast to weight dtype in-kernel)
    w1_t : [n_input, n_hidden]   (pass bf16 for best perf — no per-call cast)
    b1   : [n_hidden] or [1, n_hidden]
    w2_t : [n_hidden, n_output]  (pass bf16 for best perf)
    b2   : [n_output] or [1, n_output]
    """
    B, n_input = x.shape
    n_hidden = w1_t.shape[1]
    n_output = w2_t.shape[1]
    out_dtype = x.dtype

    # Biases in f32, broadcast on the lane axis (tiny arrays; cast is free).
    b1c = jnp.asarray(b1, jnp.float32).reshape(1, n_hidden)
    b2c = jnp.asarray(b2, jnp.float32).reshape(1, n_output)

    wsz = jnp.dtype(w1_t.dtype).itemsize
    xsz = jnp.dtype(x.dtype).itemsize
    osz = jnp.dtype(out_dtype).itemsize

    if block_b is None:
        block_b = _pick_block_b(B)
    else:
        block_b = _round_up(int(block_b), 16)   # bf16-safe sublane multiple
        if block_b >= B:
            block_b = B                         # full-dim block is always legal
    num_b = pl.cdiv(B, block_b)

    tile_n = _pick_tile_n(n_output, num_b)
    num_n = n_output // tile_n
    tile_h = _pick_tile_h(n_hidden, n_input, tile_n, wsz)
    num_h = n_hidden // tile_h if n_hidden % tile_h == 0 else pl.cdiv(n_hidden, tile_h)

    # VMEM budget for this tiling (double-buffered streaming blocks + scratch).
    vmem_est = (
        2 * block_b * n_input * xsz            # x tile
        + 2 * n_input * tile_h * wsz           # W1.T column tile
        + 2 * tile_h * 4                       # b1 tile
        + 2 * tile_h * tile_n * wsz            # W2.T row tile
        + 2 * tile_n * 4                       # b2 tile
        + 2 * block_b * tile_n * osz           # out tile
        + block_b * tile_n * 4                 # f32 accumulator scratch
        + 2 * block_b * tile_h * 4             # h intermediate (f32 + bf16)
    )
    try:
        vmem_cap = int(pltpu.get_tpu_info().vmem_capacity_bytes)
    except Exception:
        vmem_cap = 64 << 20                    # v7x-safe fallback
    vmem_ceiling = vmem_cap - (10 << 20)       # leave compiler headroom
    vmem_limit = int(min(vmem_ceiling,
                         max(32 << 20, int(1.5 * vmem_est) + (2 << 20))))

    cost = pl.CostEstimate(
        flops=2 * B * n_input * n_hidden * num_n + 2 * B * n_hidden * n_output,
        transcendentals=B * n_output,          # sigmoid exp
        bytes_accessed=(B * n_input * xsz
                        + num_b * num_n * n_input * n_hidden * wsz
                        + num_b * n_hidden * n_output * wsz
                        + (n_hidden + n_output) * 4
                        + B * n_output * osz),
    )

    return pl.pallas_call(
        _sparse_ae_kernel,
        out_shape=jax.ShapeDtypeStruct((B, n_output), out_dtype),
        grid_spec=pltpu.PrefetchScalarGridSpec(
            num_scalar_prefetch=0,
            grid=(num_b, num_n, num_h),
            in_specs=[
                pl.BlockSpec((block_b, n_input), lambda i, j, k: (i, 0)),  # x
                pl.BlockSpec((n_input, tile_h), lambda i, j, k: (0, k)),   # W1.T
                pl.BlockSpec((1, tile_h), lambda i, j, k: (0, k)),         # b1
                pl.BlockSpec((tile_h, tile_n), lambda i, j, k: (k, j)),    # W2.T
                pl.BlockSpec((1, tile_n), lambda i, j, k: (0, j)),         # b2
            ],
            out_specs=pl.BlockSpec((block_b, tile_n), lambda i, j, k: (i, j)),
            scratch_shapes=[pltpu.VMEM((block_b, tile_n), jnp.float32)],
        ),
        compiler_params=pltpu.CompilerParams(
            dimension_semantics=("parallel", "parallel", "arbitrary"),
            vmem_limit_bytes=vmem_limit),
        cost_estimate=cost,
    )(x, w1_t, b1c, w2_t, b2c)


def _reference(x, w1_t, b1, w2_t, b2):
    h = jnp.maximum(x @ w1_t + b1.reshape(1, -1), 0.0)
    return jax.nn.sigmoid(h @ w2_t + b2.reshape(1, -1))


if __name__ == "__main__":
    # Small, deterministic problem consistent with the module:
    # n_input = n_output = 256, n_hidden = 128, batch = 8.
    B, n_input, n_hidden, n_output = 8, 256, 128, 256

    key = jax.random.PRNGKey(0)
    kx, k1, k2, k3, k4 = jax.random.split(key, 5)

    x = jax.random.normal(kx, (B, n_input), dtype=jnp.float32)

    # PyTorch nn.Linear weights are [out, in]; build the transposed [in, out]
    # form directly and store it in bf16 once (no per-call convert pass).
    s1 = 1.0 / jnp.sqrt(jnp.float32(n_input))
    s2 = 1.0 / jnp.sqrt(jnp.float32(n_hidden))
    w1_t = jax.random.uniform(k1, (n_input, n_hidden), jnp.float32, -s1, s1
                              ).astype(jnp.bfloat16)
    b1 = jax.random.uniform(k2, (1, n_hidden), jnp.float32, -s1, s1)
    w2_t = jax.random.uniform(k3, (n_hidden, n_output), jnp.float32, -s2, s2
                              ).astype(jnp.bfloat16)
    b2 = jax.random.uniform(k4, (1, n_output), jnp.float32, -s2, s2)

    out = sparse_autoencoder_kl(x, w1_t, b1, w2_t, b2)
    out = jax.block_until_ready(out)

    # Reference in f32 using the same (bf16-valued) weights.
    ref = _reference(x, w1_t.astype(jnp.float32), b1,
                     w2_t.astype(jnp.float32), b2)
    assert out.shape == (B, n_output)
    # bf16 MXU operands with f32 accumulation + approx reciprocal epilogue:
    # compare against the f32 reference with a bf16-appropriate tolerance.
    assert jnp.allclose(out, ref, atol=2e-2, rtol=2e-2), "mismatch vs reference"

    print("KERNEL_OK")
</pallas_src>

<mosaic_0001>
module attributes {stable_mosaic.version = 11 : i64} {
  func.func @_sparse_ae_kernel(%arg0: i32, %arg1: i32, %arg2: i32, %arg3: memref<8x256xf32, #tpu.memory_space<vmem>>, %arg4: memref<256x128xbf16, #tpu.memory_space<vmem>>, %arg5: memref<1x128xf32, #tpu.memory_space<vmem>>, %arg6: memref<128x128xbf16, #tpu.memory_space<vmem>>, %arg7: memref<1x128xf32, #tpu.memory_space<vmem>>, %arg8: memref<8x128xf32, #tpu.memory_space<vmem>>, %arg9: memref<8x128xf32, #tpu.memory_space<vmem>>) attributes {dimension_semantics = [#tpu.dimension_semantics<parallel>, #tpu.dimension_semantics<parallel>, #tpu.dimension_semantics<arbitrary>], iteration_bounds = array<i64: 1, 2, 1>, scalar_prefetch = 0 : i64, scratch_operands = 1 : i64, tpu.core_type = #tpu.core_type<tc>, window_params = [{transform_indices = @transform_0, window_bounds = array<i64: 8, 256>}, {transform_indices = @transform_1, window_bounds = array<i64: 256, 128>}, {transform_indices = @transform_2, window_bounds = array<i64: 1, 128>}, {transform_indices = @transform_3, window_bounds = array<i64: 128, 128>}, {transform_indices = @transform_4, window_bounds = array<i64: 1, 128>}, {transform_indices = @transform_5, window_bounds = array<i64: 8, 128>}]} {
    %c0_i32 = arith.constant 0 : i32
    %0 = arith.cmpi eq, %arg2, %c0_i32 : i32
    %1 = arith.extui %0 : i1 to i32
    %c0_i32_0 = arith.constant 0 : i32
    %2 = arith.cmpi ne, %1, %c0_i32_0 : i32
    scf.if %2 {
      %cst_16 = arith.constant 0.000000e+00 : f32
      %21 = vector.broadcast %cst_16 : f32 to vector<8x128xf32>
      %c0_17 = arith.constant 0 : index
      %c0_18 = arith.constant 0 : index
      %22 = vector.load %arg9[%c0_17, %c0_18] : memref<8x128xf32, #tpu.memory_space<vmem>>, vector<8x128xf32>
      tpu.vector_store %arg9[%c0_17, %c0_18], %21 {strides = array<i32>} : memref<8x128xf32, #tpu.memory_space<vmem>>, vector<8x128xf32>,
    } else {
    }
    %c0 = arith.constant 0 : index
    %c0_1 = arith.constant 0 : index
    %3 = vector.load %arg3[%c0, %c0_1] : memref<8x256xf32, #tpu.memory_space<vmem>>, vector<8x256xf32>
    %4 = arith.truncf %3 : vector<8x256xf32> to vector<8x256xbf16>
    %c0_2 = arith.constant 0 : index
    %c0_3 = arith.constant 0 : index
    %5 = vector.load %arg4[%c0_2, %c0_3] : memref<256x128xbf16, #tpu.memory_space<vmem>>, vector<256x128xbf16>
    %cst = arith.constant dense<0.000000e+00> : vector<8x128xf32>
    %6 = tpu.matmul %4, %5, %cst {dimension_numbers = #tpu.dot_dimension_numbers<[1], [0], [0], [1], [0, 0, 1, 1], [], []>} : vector<8x256xbf16>, vector<256x128xbf16>, vector<8x128xf32> -> vector<8x128xf32>
    %c0_4 = arith.constant 0 : index
    %c0_5 = arith.constant 0 : index
    %7 = vector.load %arg5[%c0_4, %c0_5] : memref<1x128xf32, #tpu.memory_space<vmem>>, vector<1x128xf32>
    %8 = vector.broadcast %7 : vector<1x128xf32> to vector<8x128xf32>
    %9 = arith.addf %6, %8 : vector<8x128xf32>
    %cst_6 = arith.constant 0.000000e+00 : f32
    %10 = vector.broadcast %cst_6 : f32 to vector<8x128xf32>
    %11 = arith.maximumf %9, %10 : vector<8x128xf32>
    %c0_7 = arith.constant 0 : index
    %c0_8 = arith.constant 0 : index
    %12 = vector.load %arg9[%c0_7, %c0_8] : memref<8x128xf32, #tpu.memory_space<vmem>>, vector<8x128xf32>
    %13 = arith.truncf %11 : vector<8x128xf32> to vector<8x128xbf16>
    %c0_9 = arith.constant 0 : index
    %c0_10 = arith.constant 0 : index
    %14 = vector.load %arg6[%c0_9, %c0_10] : memref<128x128xbf16, #tpu.memory_space<vmem>>, vector<128x128xbf16>
    %cst_11 = arith.constant dense<0.000000e+00> : vector<8x128xf32>
    %15 = tpu.matmul %13, %14, %cst_11 {dimension_numbers = #tpu.dot_dimension_numbers<[1], [0], [0], [1], [0, 0, 1, 1], [], []>} : vector<8x128xbf16>, vector<128x128xbf16>, vector<8x128xf32> -> vector<8x128xf32>
    %16 = arith.addf %12, %15 : vector<8x128xf32>
    %c0_12 = arith.constant 0 : index
    %c0_13 = arith.constant 0 : index
    %17 = vector.load %arg9[%c0_12, %c0_13] : memref<8x128xf32, #tpu.memory_space<vmem>>, vector<8x128xf32>
    tpu.vector_store %arg9[%c0_12, %c0_13], %16 {strides = array<i32>} : memref<8x128xf32, #tpu.memory_space<vmem>>, vector<8x128xf32>,
    %c0_i32_14 = arith.constant 0 : i32
    %18 = arith.cmpi eq, %arg2, %c0_i32_14 : i32
    %19 = arith.extui %18 : i1 to i32
    %c0_i32_15 = arith.constant 0 : i32
    %20 = arith.cmpi ne, %19, %c0_i32_15 : i32
    scf.if %20 {
      %c0_16 = arith.constant 0 : index
      %c0_17 = arith.constant 0 : index
      %21 = vector.load %arg9[%c0_16, %c0_17] : memref<8x128xf32, #tpu.memory_space<vmem>>, vector<8x128xf32>
      %c0_18 = arith.constant 0 : index
      %c0_19 = arith.constant 0 : index
      %22 = vector.load %arg7[%c0_18, %c0_19] : memref<1x128xf32, #tpu.memory_space<vmem>>, vector<1x128xf32>
      %23 = vector.broadcast %22 : vector<1x128xf32> to vector<8x128xf32>
      %24 = arith.addf %21, %23 : vector<8x128xf32>
      %cst_20 = arith.constant 0.000000e+00 : f32
      %25 = vector.broadcast %cst_20 : f32 to vector<8x128xf32>
      %26 = arith.subf %25, %24 : vector<8x128xf32>
      %27 = math.exp %26 : vector<8x128xf32>
      %cst_21 = arith.constant 1.000000e+00 : f32
      %28 = vector.broadcast %cst_21 : f32 to vector<8x128xf32>
      %29 = arith.addf %28, %27 : vector<8x128xf32>
      %30 = tpu.reciprocal %29 {approx = true} : vector<8x128xf32> -> vector<8x128xf32>
      %c0_22 = arith.constant 0 : index
      %c0_23 = arith.constant 0 : index
      %31 = vector.load %arg8[%c0_22, %c0_23] : memref<8x128xf32, #tpu.memory_space<vmem>>, vector<8x128xf32>
      tpu.vector_store %arg8[%c0_22, %c0_23], %30 {strides = array<i32>} : memref<8x128xf32, #tpu.memory_space<vmem>>, vector<8x128xf32>,
    } else {
    }
    return
  }
  func.func @transform_0(%arg0: i32, %arg1: i32, %arg2: i32) -> (i32, i32) {
    %c0_i32 = arith.constant 0 : i32
    %c0_i32_0 = arith.constant 0 : i32
    return %arg0, %c0_i32 : i32, i32
  }
  func.func @transform_1(%arg0: i32, %arg1: i32, %arg2: i32) -> (i32, i32) {
    %c0_i32 = arith.constant 0 : i32
    %c0_i32_0 = arith.constant 0 : i32
    return %c0_i32, %arg2 : i32, i32
  }
  func.func @transform_2(%arg0: i32, %arg1: i32, %arg2: i32) -> (i32, i32) {
    %c0_i32 = arith.constant 0 : i32
    %c0_i32_0 = arith.constant 0 : i32
    return %c0_i32, %arg2 : i32, i32
  }
  func.func @transform_3(%arg0: i32, %arg1: i32, %arg2: i32) -> (i32, i32) {
    %c0_i32 = arith.constant 0 : i32
    return %arg2, %arg1 : i32, i32
  }
  func.func @transform_4(%arg0: i32, %arg1: i32, %arg2: i32) -> (i32, i32) {
    %c0_i32 = arith.constant 0 : i32
    %c0_i32_0 = arith.constant 0 : i32
    return %c0_i32, %arg1 : i32, i32
  }
  func.func @transform_5(%arg0: i32, %arg1: i32, %arg2: i32) -> (i32, i32) {
    %c0_i32 = arith.constant 0 : i32
    return %arg0, %arg1 : i32, i32
  }
}

</mosaic_0001>

<llo_original>
// kernel: tpu_custom_call.1
$region0: #{tpu_custom_call.1}
  #allocation0 [shape = 'u32[]', space=smem, size = 0x4, offset = 0x4, fixed_abs, tag = 'smem constant byte address 0x4 - core index']
  #allocation1 [shape = 'u32[144,128]{1,0:T(1,128)}', space=vmem, size = 0x12000, scoped, tag = 'internal scratch']
  #allocation2 [shape = 'f32[8,128]{1,0:T(8,128)}', space=vmem, size = 0x1000, scoped, tag = 'scratch operand']
  %s0 = inlined_call_operand.hbm [shape: f32[8,256], index: 0, kind: input, shape index: {}]
  %s1 = inlined_call_operand.hbm [shape: bf16[256,128], index: 1, kind: input, shape index: {}]
  %s2 = inlined_call_operand.vmem [shape: f32[1,128], index: 2, kind: input, shape index: {}]
  %s3 = inlined_call_operand.hbm [shape: bf16[128,256], index: 3, kind: input, shape index: {}]
  %s4 = inlined_call_operand.vmem [shape: f32[1,256], index: 4, kind: input, shape index: {}]
  %s5 = inlined_call_operand.hbm [shape: f32[8,256], index: 5, kind: output, shape index: {}]
  %s6 = sld [smem:[#allocation0]]
  $region73: #{tpu_custom_call.1} parent=0
    _
  %s8 = ssub.s32 1, %s6
  %s9 = scalar_select 0, %s8, %s6
  $region1: #{tpu_custom_call.1} parent=0
    #allocation3 [shape = 'u8[8192]{0}', space=vmem, size = 0x2000, scoped, tag = 'input window, operand 0, single buffered']
    #allocation4 [shape = 's32[2]{0}', space=sflag, size = 0x8, scoped, tag = 'scoped memory for tpu_custom_call.1']
    #allocation5 [shape = 's32[2]{0}', space=sflag, size = 0x8, scoped, tag = 'scoped memory for tpu_custom_call.1']
    #allocation6 [shape = 'u8[65536]{0}', space=vmem, size = 0x10000, scoped, tag = 'input window, operand 1, single buffered']
    #allocation7 [shape = 's32[1]{0}', space=sflag, size = 0x4, scoped, tag = 'scoped memory for tpu_custom_call.1']
    #allocation8 [shape = 'u8[65536]{0}', space=vmem, size = 0x10000, scoped, tag = 'input window, operand 3']
    #allocation9 [shape = 'u8[8192]{0}', space=vmem, size = 0x2000, scoped, tag = 'output window, operand 0']
    %10 = vsyncpa [#allocation4], 0
    %11 = vsyncpa [#allocation7], 0
    %12 = vsyncpa [#allocation5], 0
    %s13 = scalar_lea.sflag [#allocation5], 1
    %14 = vsyncpa %s13, 0
    loop: start=0, step=1, limit=4
    $region2: #{tpu_custom_call.1} parent=1 // loop_pre_header
      _
    $region3: #{tpu_custom_call.1} parent=1 // loop_header
      %s16 = sphi 0, %s20
      %p17 = scmp.ge.s32.totalorder %s16, 4
      %s23 = sphi 0, %s42
      %s24 = sphi 0, %s38
      %s25 = sphi 0, %s34
      %s26 = sphi 0, %s23
      %s27 = sphi 0, %s24
      %s28 = sphi 0, %s25
      %s29 = sphi 0, %s26
      %s30 = sphi 0, %s27
      %s31 = sphi 0, %s28
      %s45 = sphi 0, %s47
      %s48 = sphi 0, %s45
      %s49 = sphi 0, %s48
      %s65 = sphi 0, %s49
      %s71 = sphi 0, %s73
      %s74 = sphi 0, %s71
      %s75 = sphi 0, %s74
      %s91 = sphi 0, %s75
      %s97 = sphi 0, %s99
      %s100 = sphi 0, %s97
      %s101 = sphi 0, %s100
      %s117 = sphi 0, %s101
      %s125 = sphi 0, %s127
      %s128 = sphi 0, %s125
      %s129 = sphi 0, %s128
      %s145 = sphi 0, %s129
      %s151 = sphi 0, %s153
      %s154 = sphi 0, %s151
      %s155 = sphi 0, %s154
      %s171 = sphi 0, %s155
      %s179 = sphi 0, %s181
      %s182 = sphi 0, %s179
      %s183 = sphi 0, %s182
      %s199 = sphi 0, %s183
    $region4: #{tpu_custom_call.1} parent=1 // loop_header_branch
      %19 = sbr.rel (%p17) target = $region8
    $region5: #{tpu_custom_call.1} parent=1 // loop_body
      %s21 = ssub.s32 %s16, 1
      %s22 = ssub.s32 %s16, 2
      %s32 = sadd.s32 1, %s25
      %p33 = scmp.ge.s32.totalorder %s32, 1
      %s34 = scalar_select %p33, 0, %s32
      %s35 = sadd.s32 1, %s24
      %s36 = scalar_select %p33, %s35, %s24
      %p37 = scmp.ge.s32.totalorder %s36, 2
      %s38 = scalar_select %p37, 0, %s36
      %s39 = sadd.s32 1, %s23
      %s40 = scalar_select %p37, %s39, %s23
      %p41 = scmp.ge.s32.totalorder %s40, 1
      %s42 = scalar_select %p41, 0, %s40
      %s43 = ssub.s32 %s23, %s42
      %p44 = scmp.eq.s32.totalorder %s43, 0
      %s46 = sadd.s32 %s45, 1
      %s47 = scalar_select %p44, %s45, %s46
      %p50 = pneg %p44
      %p51 = scmp.eq.s32.totalorder %s16, 1
      %p52 = por %p50, %p51
      %p53 = scmp.ne.s32.totalorder %s45, %s48
      %p54 = scmp.eq.s32.totalorder %s16, 0
      %p55 = por %p53, %p54
      %p56 = scmp.ne.s32.totalorder %s45, %s48
      %p57 = scmp.eq.s32.totalorder %s21, 1
      %p58 = por %p56, %p57
      %p59 = scmp.ne.s32.totalorder %s48, %s49
      %p60 = scmp.eq.s32.totalorder %s21, 0
      %p61 = por %p59, %p60
      %p62 = scmp.ne.s32.totalorder %s48, %s49
      %p63 = scmp.eq.s32.totalorder %s22, 1
      %p64 = por %p62, %p63
      %p66 = scmp.ne.s32.totalorder %s49, %s65
      %p67 = scmp.eq.s32.totalorder %s22, 0
      %p68 = por %p66, %p67
      %s69 = ssub.s32 %s25, %s34
      %p70 = scmp.eq.s32.totalorder %s69, 0
      %s72 = sadd.s32 %s71, 1
      %s73 = scalar_select %p70, %s71, %s72
      %p76 = pneg %p70
      %p77 = scmp.eq.s32.totalorder %s16, 1
      %p78 = por %p76, %p77
      %p79 = scmp.ne.s32.totalorder %s71, %s74
      %p80 = scmp.eq.s32.totalorder %s16, 0
      %p81 = por %p79, %p80
      %p82 = scmp.ne.s32.totalorder %s71, %s74
      %p83 = scmp.eq.s32.totalorder %s21, 1
      %p84 = por %p82, %p83
      %p85 = scmp.ne.s32.totalorder %s74, %s75
      %p86 = scmp.eq.s32.totalorder %s21, 0
      %p87 = por %p85, %p86
      %p88 = scmp.ne.s32.totalorder %s74, %s75
      %p89 = scmp.eq.s32.totalorder %s22, 1
      %p90 = por %p88, %p89
      %p92 = scmp.ne.s32.totalorder %s75, %s91
      %p93 = scmp.eq.s32.totalorder %s22, 0
      %p94 = por %p92, %p93
      %s95 = ssub.s32 %s25, %s34
      %p96 = scmp.eq.s32.totalorder %s95, 0
      %s98 = sadd.s32 %s97, 1
      %s99 = scalar_select %p96, %s97, %s98
      %p102 = pneg %p96
      %p103 = scmp.eq.s32.totalorder %s16, 1
      %p104 = por %p102, %p103
      %p105 = scmp.ne.s32.totalorder %s97, %s100
      %p106 = scmp.eq.s32.totalorder %s16, 0
      %p107 = por %p105, %p106
      %p108 = scmp.ne.s32.totalorder %s97, %s100
      %p109 = scmp.eq.s32.totalorder %s21, 1
      %p110 = por %p108, %p109
      %p111 = scmp.ne.s32.totalorder %s100, %s101
      %p112 = scmp.eq.s32.totalorder %s21, 0
      %p113 = por %p111, %p112
      %p114 = scmp.ne.s32.totalorder %s100, %s101
      %p115 = scmp.eq.s32.totalorder %s22, 1
      %p116 = por %p114, %p115
      %p118 = scmp.ne.s32.totalorder %s101, %s117
      %p119 = scmp.eq.s32.totalorder %s22, 0
      %p120 = por %p118, %p119
      %s121 = ssub.s32 %s25, %s34
      %s122 = ssub.s32 %s24, %s38
      %s123 = sor.u32 %s121, %s122
      %p124 = scmp.eq.s32.totalorder %s123, 0
      %s126 = sadd.s32 %s125, 1
      %s127 = scalar_select %p124, %s125, %s126
      %p130 = pneg %p124
      %p131 = scmp.eq.s32.totalorder %s16, 1
      %p132 = por %p130, %p131
      %p133 = scmp.ne.s32.totalorder %s125, %s128
      %p134 = scmp.eq.s32.totalorder %s16, 0
      %p135 = por %p133, %p134
      %p136 = scmp.ne.s32.totalorder %s125, %s128
      %p137 = scmp.eq.s32.totalorder %s21, 1
      %p138 = por %p136, %p137
      %p139 = scmp.ne.s32.totalorder %s128, %s129
      %p140 = scmp.eq.s32.totalorder %s21, 0
      %p141 = por %p139, %p140
      %p142 = scmp.ne.s32.totalorder %s128, %s129
      %p143 = scmp.eq.s32.totalorder %s22, 1
      %p144 = por %p142, %p143
      %p146 = scmp.ne.s32.totalorder %s129, %s145
      %p147 = scmp.eq.s32.totalorder %s22, 0
      %p148 = por %p146, %p147
      %s149 = ssub.s32 %s24, %s38
      %p150 = scmp.eq.s32.totalorder %s149, 0
      %s152 = sadd.s32 %s151, 1
      %s153 = scalar_select %p150, %s151, %s152
      %p156 = pneg %p150
      %p157 = scmp.eq.s32.totalorder %s16, 1
      %p158 = por %p156, %p157
      %p159 = scmp.ne.s32.totalorder %s151, %s154
      %p160 = scmp.eq.s32.totalorder %s16, 0
      %p161 = por %p159, %p160
      %p162 = scmp.ne.s32.totalorder %s151, %s154
      %p163 = scmp.eq.s32.totalorder %s21, 1
      %p164 = por %p162, %p163
      %p165 = scmp.ne.s32.totalorder %s154, %s155
      %p166 = scmp.eq.s32.totalorder %s21, 0
      %p167 = por %p165, %p166
      %p168 = scmp.ne.s32.totalorder %s154, %s155
      %p169 = scmp.eq.s32.totalorder %s22, 1
      %p170 = por %p168, %p169
      %p172 = scmp.ne.s32.totalorder %s155, %s171
      %p173 = scmp.eq.s32.totalorder %s22, 0
      %p174 = por %p172, %p173
      %s175 = ssub.s32 %s23, %s42
      %s176 = ssub.s32 %s24, %s38
      %s177 = sor.u32 %s175, %s176
      %p178 = scmp.eq.s32.totalorder %s177, 0
      %s180 = sadd.s32 %s179, 1
      %s181 = scalar_select %p178, %s179, %s180
      %p184 = pneg %p178
      %p185 = scmp.eq.s32.totalorder %s16, 1
      %p186 = por %p184, %p185
      %p187 = scmp.ne.s32.totalorder %s179, %s182
      %p188 = scmp.eq.s32.totalorder %s16, 0
      %p189 = por %p187, %p188
      %p190 = scmp.ne.s32.totalorder %s179, %s182
      %p191 = scmp.eq.s32.totalorder %s21, 1
      %p192 = por %p190, %p191
      %p193 = scmp.ne.s32.totalorder %s182, %s183
      %p194 = scmp.eq.s32.totalorder %s21, 0
      %p195 = por %p193, %p194
      %p196 = scmp.ne.s32.totalorder %s182, %s183
      %p197 = scmp.eq.s32.totalorder %s22, 1
      %p198 = por %p196, %p197
      %p200 = scmp.ne.s32.totalorder %s183, %s199
      %p201 = scmp.eq.s32.totalorder %s22, 0
      %p202 = por %p200, %p201
      %p203 = scmp.le.s32.totalorder 1, %s16
      %p204 = scmp.lt.s32.totalorder %s16, 3
      %p205 = pnand %p203, %p204
      %p206 = pneg %p205
      // Predicated region
      $region9: #{tpu_custom_call.1} parent=5 // pred_check
        _
      $region10: #{tpu_custom_call.1} parent=5 // pred_check_branch
        %208 = sbr.rel (%p205) target = $region12
      $region11: #{tpu_custom_call.1} parent=5 // pred_region
        %s209 = ssub.s32 %s16, 1
        // Predicated region
        $region13: #{tpu_custom_call.1} parent=11 // pred_check
          %p210 = pneg %p61
        $region14: #{tpu_custom_call.1} parent=11 // pred_check_branch
          %212 = sbr.rel (%p210) target = $region16
        $region15: #{tpu_custom_call.1} parent=11 // pred_region
          %s214 = ssub.s32 256, 256
          %215 = vsyncadd [#allocation4], %s214
          %s216 = smul.addr %s26, 2
          %s217 = smul.addr %s216, 128
          %s218 = scalar_lea.hbm %s0, %s217
          %s220 = sshll.u32 [#allocation3], 4
          %s221 = int_to_ptr.vmem [resolvable:$true] %s220
          %223 = dma.hbm_to_vmem [thread:$0]  %s218, 256, %s221, [#allocation4]
        $region16: #{tpu_custom_call.1} parent=11 // pred_fallthru
          _
        // Predicated region
        $region17: #{tpu_custom_call.1} parent=11 // pred_check
          %p224 = pneg %p87
        $region18: #{tpu_custom_call.1} parent=11 // pred_check_branch
          %226 = sbr.rel (%p224) target = $region20
        $region19: #{tpu_custom_call.1} parent=11 // pred_region
          %s228 = ssub.s32 2048, 2048
          %229 = vsyncadd [#allocation7], %s228
          %s230 = smul.addr %s28, 64
          %s231 = scalar_lea.hbm %s1, %s230
          %s232 = sshll.u32 [#allocation6], 4
          %s233 = int_to_ptr.vmem [resolvable:$true] %s232
          %238 = dma.hbm_to_vmem [thread:$0]  %s231, 2048, %s233, [#allocation7], 64, 64, 4
        $region20: #{tpu_custom_call.1} parent=11 // pred_fallthru
          _
        // Predicated region
        $region21: #{tpu_custom_call.1} parent=11 // pred_check
          %p239 = pneg %p113
        $region22: #{tpu_custom_call.1} parent=11 // pred_check_branch
          %241 = sbr.rel (%p239) target = $region24
        $region23: #{tpu_custom_call.1} parent=11 // pred_region
          %p242 = scmp.lt.s32.totalorder %s28, 0
          %s243 = scalar_select %p242, %s28, 0
          %s244 = scalar_lea.vmem %s2, %s243
        $region24: #{tpu_custom_call.1} parent=11 // pred_fallthru
          _
      $region12: #{tpu_custom_call.1} parent=5 // pred_fallthru
        _
      %p245 = scmp.lt.s32.totalorder %s16, 2
      // Predicated region
      $region25: #{tpu_custom_call.1} parent=5 // pred_check
        %p246 = pneg %p245
      $region26: #{tpu_custom_call.1} parent=5 // pred_check_branch
        %248 = sbr.rel (%p246) target = $region28
      $region27: #{tpu_custom_call.1} parent=5 // pred_region
        // Predicated region
        $region29: #{tpu_custom_call.1} parent=27 // pred_check
          %p249 = pneg %p135
        $region30: #{tpu_custom_call.1} parent=27 // pred_check_branch
          %251 = sbr.rel (%p249) target = $region32
        $region31: #{tpu_custom_call.1} parent=27 // pred_region
          %s252 = sand.u32 %s16, 1
          %s253 = scalar_lea.sflag [#allocation4], %s252
          %s254 = sand.u32 %s125, 1
          %s255 = smul.addr %s254, 64
          %s256 = scalar_lea.vmem [#allocation8], %s255
          %s257 = smul.u32 16, %s25
          %s259 = ssub.s32 1024, 1024
          %260 = vsyncadd %s253, %s259
          %s261 = smul.addr %s257, 2
          %s262 = sadd.s32 %s24, %s261
          %s263 = smul.addr %s262, 64
          %s264 = scalar_lea.hbm %s3, %s263
          %s265 = sshll.u32 %s256, 4
          %s266 = int_to_ptr.vmem [resolvable:$true] %s265
          %271 = dma.hbm_to_vmem [thread:$0]  %s264, 1024, %s266, %s253, 128, 64, 4
        $region32: #{tpu_custom_call.1} parent=27 // pred_fallthru
          _
        // Predicated region
        $region33: #{tpu_custom_call.1} parent=27 // pred_check
          %p272 = pneg %p161
        $region34: #{tpu_custom_call.1} parent=27 // pred_check_branch
          %274 = sbr.rel (%p272) target = $region36
        $region35: #{tpu_custom_call.1} parent=27 // pred_region
          %p275 = scmp.lt.s32.totalorder %s24, 1
          %s276 = scalar_select %p275, %s24, 1
          %s277 = scalar_lea.vmem %s4, %s276
        $region36: #{tpu_custom_call.1} parent=27 // pred_fallthru
          _
      $region28: #{tpu_custom_call.1} parent=5 // pred_fallthru
        _
      %p278 = scmp.le.s32.totalorder 1, %s16
      %p279 = scmp.lt.s32.totalorder %s16, 3
      %p280 = pnand %p278, %p279
      %p281 = pneg %p280
      // Predicated region
      $region37: #{tpu_custom_call.1} parent=5 // pred_check
        _
      $region38: #{tpu_custom_call.1} parent=5 // pred_check_branch
        %283 = sbr.rel (%p280) target = $region40
      $region39: #{tpu_custom_call.1} parent=5 // pred_region
        %s284 = ssub.s32 %s16, 1
        // Predicated region
        $region41: #{tpu_custom_call.1} parent=39 // pred_check
          %p285 = pneg %p61
        $region42: #{tpu_custom_call.1} parent=39 // pred_check_branch
          %287 = sbr.rel (%p285) target = $region44
        $region43: #{tpu_custom_call.1} parent=39 // pred_region
          %288 = dma.done [#allocation4], 256
        $region44: #{tpu_custom_call.1} parent=39 // pred_fallthru
          _
        // Predicated region
        $region45: #{tpu_custom_call.1} parent=39 // pred_check
          %p289 = pneg %p87
        $region46: #{tpu_custom_call.1} parent=39 // pred_check_branch
          %291 = sbr.rel (%p289) target = $region48
        $region47: #{tpu_custom_call.1} parent=39 // pred_region
          %292 = dma.done [#allocation7], 2048
        $region48: #{tpu_custom_call.1} parent=39 // pred_fallthru
          _
        %s293 = sand.u32 %s21, 1
        %s294 = scalar_lea.sflag [#allocation4], %s293
        %s295 = sand.u32 %s128, 1
        %s296 = smul.addr %s295, 64
        %s297 = scalar_lea.vmem [#allocation8], %s296
        // Predicated region
        $region49: #{tpu_custom_call.1} parent=39 // pred_check
          %p298 = pneg %p141
        $region50: #{tpu_custom_call.1} parent=39 // pred_check_branch
          %300 = sbr.rel (%p298) target = $region52
        $region51: #{tpu_custom_call.1} parent=39 // pred_region
          %301 = dma.done %s294, 1024
        $region52: #{tpu_custom_call.1} parent=39 // pred_fallthru
          _
        %p302 = pneg %p61
        %p303 = pneg %p58
        %p304 = pneg %p87
        %p305 = pneg %p84
        %p306 = scmp.lt.s32.totalorder %s28, 0
        %s307 = scalar_select %p306, %s28, 0
        %s308 = scalar_lea.vmem %s2, %s307
        %p309 = pneg %p113
        %p310 = pneg %p110
        %s311 = sand.u32 %s21, 1
        %s312 = scalar_lea.sflag [#allocation4], %s311
        %s313 = sand.u32 %s128, 1
        %s314 = smul.addr %s313, 64
        %s315 = scalar_lea.vmem [#allocation8], %s314
        %p316 = pneg %p141
        %p317 = pneg %p138
        %p318 = scmp.lt.s32.totalorder %s27, 1
        %s319 = scalar_select %p318, %s27, 1
        %s320 = scalar_lea.vmem %s4, %s319
        %p321 = pneg %p167
        %p322 = pneg %p164
        %p323 = pneg %p195
        %p324 = pneg %p192
        %s325 = sand.u32 %s182, 1
        %s326 = scalar_lea.sflag [#allocation5], %s325
        %s327 = sand.u32 %s182, 1
        %s328 = smul.addr %s327, 8
        %s329 = scalar_lea.vmem [#allocation9], %s328
        %p330 = scmp.lt.s32.totalorder %s28, 0
        %s331 = scalar_select %p330, %s28, 0
        %s332 = scalar_lea.vmem %s2, %s331
        %s333 = smul.u32 16, %s28
        %p334 = scmp.lt.s32.totalorder %s27, 1
        %s335 = scalar_select %p334, %s27, 1
        %s336 = scalar_lea.vmem %s4, %s335
        %p338 = scmp.eq.s32.totalorder %s28, 0
        // Predicated region
        $region53: #{tpu_custom_call.1} parent=39 // pred_check
          %p339 = pneg %p338
        $region54: #{tpu_custom_call.1} parent=39 // pred_check_branch
          %341 = sbr.rel (%p339) target = $region56
        $region55: #{tpu_custom_call.1} parent=39 // pred_region
          %342 = vst [vmem:[#allocation2] sm:$0xff] 0.0
        $region56: #{tpu_custom_call.1} parent=39 // pred_fallthru
          _
        %v343 = vld [vmem:[#allocation3] sm:$0xff]
        %v344 = vld [vmem:[#allocation3 + $0x8] sm:$0xff]
        %v345 = vpack.c.bf16 %v343, %v343
        %v346 = vpack.c.bf16 %v344, %v344
        %v347 = vld [vmem:[#allocation6] sm:$0xf]
        %v348 = vld [vmem:[#allocation6 + $0x4] sm:$0xf]
        %v349 = vld [vmem:[#allocation6 + $0x8] sm:$0xf]
        %v350 = vld [vmem:[#allocation6 + $0xc] sm:$0xf]
        %v351 = vld [vmem:[#allocation6 + $0x10] sm:$0xf]
        %v352 = vld [vmem:[#allocation6 + $0x14] sm:$0xf]
        %v353 = vld [vmem:[#allocation6 + $0x18] sm:$0xf]
        %v354 = vld [vmem:[#allocation6 + $0x1c] sm:$0xf]
        %v355 = vld [vmem:[#allocation6 + $0x20] sm:$0xf]
        %v356 = vld [vmem:[#allocation6 + $0x24] sm:$0xf]
        %v357 = vld [vmem:[#allocation6 + $0x28] sm:$0xf]
        %v358 = vld [vmem:[#allocation6 + $0x2c] sm:$0xf]
        %v359 = vld [vmem:[#allocation6 + $0x30] sm:$0xf]
        %v360 = vld [vmem:[#allocation6 + $0x34] sm:$0xf]
        %v361 = vld [vmem:[#allocation6 + $0x38] sm:$0xf]
        %v362 = vld [vmem:[#allocation6 + $0x3c] sm:$0xf]
        %v363 = vld [vmem:[#allocation6 + $0x40] sm:$0xf]
        %v364 = vld [vmem:[#allocation6 + $0x44] sm:$0xf]
        %v365 = vld [vmem:[#allocation6 + $0x48] sm:$0xf]
        %v366 = vld [vmem:[#allocation6 + $0x4c] sm:$0xf]
        %v367 = vld [vmem:[#allocation6 + $0x50] sm:$0xf]
        %v368 = vld [vmem:[#allocation6 + $0x54] sm:$0xf]
        %v369 = vld [vmem:[#allocation6 + $0x58] sm:$0xf]
        %v370 = vld [vmem:[#allocation6 + $0x5c] sm:$0xf]
        %v371 = vld [vmem:[#allocation6 + $0x60] sm:$0xf]
        %v372 = vld [vmem:[#allocation6 + $0x64] sm:$0xf]
        %v373 = vld [vmem:[#allocation6 + $0x68] sm:$0xf]
        %v374 = vld [vmem:[#allocation6 + $0x6c] sm:$0xf]
        %v375 = vld [vmem:[#allocation6 + $0x70] sm:$0xf]
        %v376 = vld [vmem:[#allocation6 + $0x74] sm:$0xf]
        %v377 = vld [vmem:[#allocation6 + $0x78] sm:$0xf]
        %v378 = vld [vmem:[#allocation6 + $0x7c] sm:$0xf]
        %v379 = vld [vmem:[%s332] sm:$0x1]
        %v381 = vlaneseq
        %v382 = vshrl.u32 %v381, 7
        %v383 = vsub.s32 0, %v382
        %v384 = vrot.slane %v379, %v383
        %v418 = vunpack.c.l.b16 %v347
        %v419 = vunpack.c.l.b16 %v348
        %v420 = vunpack.c.l.b16 %v349
        %v421 = vunpack.c.l.b16 %v350
        %v422 = vunpack.c.l.b16 %v351
        %v423 = vunpack.c.l.b16 %v352
        %v424 = vunpack.c.l.b16 %v353
        %v425 = vunpack.c.l.b16 %v354
        %v426 = vunpack.c.l.b16 %v355
        %v427 = vunpack.c.l.b16 %v356
        %v428 = vunpack.c.l.b16 %v357
        %v429 = vunpack.c.l.b16 %v358
        %v430 = vunpack.c.l.b16 %v359
        %v431 = vunpack.c.l.b16 %v360
        %v432 = vunpack.c.l.b16 %v361
        %v433 = vunpack.c.l.b16 %v362
        %v434 = vunpack.c.l.b16 %v363
        %v435 = vunpack.c.l.b16 %v364
        %v436 = vunpack.c.l.b16 %v365
        %v437 = vunpack.c.l.b16 %v366
        %v438 = vunpack.c.l.b16 %v367
        %v439 = vunpack.c.l.b16 %v368
        %v440 = vunpack.c.l.b16 %v369
        %v441 = vunpack.c.l.b16 %v370
        %v442 = vunpack.c.l.b16 %v371
        %v443 = vunpack.c.l.b16 %v372
        %v444 = vunpack.c.l.b16 %v373
        %v445 = vunpack.c.l.b16 %v374
        %v446 = vunpack.c.l.b16 %v375
        %v447 = vunpack.c.l.b16 %v376
        %v448 = vunpack.c.l.b16 %v377
        %v449 = vunpack.c.l.b16 %v378
        %v450 = vpack.c.b16 %v419, %v418
        %v451 = vpack.c.b16 %v421, %v420
        %v452 = vpack.c.b16 %v423, %v422
        %v453 = vpack.c.b16 %v425, %v424
        %v454 = vpack.c.b16 %v427, %v426
        %v455 = vpack.c.b16 %v429, %v428
        %v456 = vpack.c.b16 %v431, %v430
        %v457 = vpack.c.b16 %v433, %v432
        %v458 = vpack.c.b16 %v435, %v434
        %v459 = vpack.c.b16 %v437, %v436
        %v460 = vpack.c.b16 %v439, %v438
        %v461 = vpack.c.b16 %v441, %v440
        %v462 = vpack.c.b16 %v443, %v442
        %v463 = vpack.c.b16 %v445, %v444
        %v464 = vpack.c.b16 %v447, %v446
        %v465 = vpack.c.b16 %v449, %v448
        %482 = vmatprep.subr.bf16.mxu0 0
        %483 = vmatpush1.bf16.msra.mxu0 %v457
        %484 = vmatprep.subr.bf16.mxu0 0
        %485 = vmatpush1.bf16.msra.mxu0 %v456
        %486 = vmatprep.subr.bf16.mxu0 0
        %487 = vmatpush1.bf16.msra.mxu0 %v455
        %488 = vmatprep.subr.bf16.mxu0 0
        %489 = vmatpush1.bf16.msra.mxu0 %v454
        %490 = vmatprep.subr.bf16.mxu0 0
        %491 = vmatpush1.bf16.msra.mxu0 %v453
        %492 = vmatprep.subr.bf16.mxu0 0
        %493 = vmatpush1.bf16.msra.mxu0 %v452
        %494 = vmatprep.subr.bf16.mxu0 0
        %495 = vmatpush1.bf16.msra.mxu0 %v451
        %496 = vmatprep.subr.bf16.mxu0 0
        %497 = vmatpush1.bf16.msra.mxu0 %v450
        %498 = vmatprep.subr.bf16.mxu0 0
        %499 = vmatpush2.bf16.msra.mxu0 %v465
        %500 = vmatprep.subr.bf16.mxu0 0
        %501 = vmatpush2.bf16.msra.mxu0 %v464
        %502 = vmatprep.subr.bf16.mxu0 0
        %503 = vmatpush2.bf16.msra.mxu0 %v463
        %504 = vmatprep.subr.bf16.mxu0 0
        %505 = vmatpush2.bf16.msra.mxu0 %v462
        %506 = vmatprep.subr.bf16.mxu0 0
        %507 = vmatpush2.bf16.msra.mxu0 %v461
        %508 = vmatprep.subr.bf16.mxu0 0
        %509 = vmatpush2.bf16.msra.mxu0 %v460
        %510 = vmatprep.subr.bf16.mxu0 0
        %511 = vmatpush2.bf16.msra.mxu0 %v459
        %512 = vmatprep.subr.bf16.mxu0 0
        %513 = vmatpush2.bf16.msra.mxu0 %v458
        %514 = vmatprep.mubr.bf16.mxu0 %v346
        %515 = vmatmul.mubr.bf16.gmra.mxu0 %v345
        %v516 = vpop.f32.mrf.mxu0
        %v517 = vadd.f32 %v384, %v516
        %v518 = vpop.f32.mrf.mxu0
        %v519 = vpop.f32.mrf.mxu0
        %v520 = vpop.f32.mrf.mxu0
        %521 = vdwg.mxu0
        %v522 = vmax.f32 %v517, 0.0
        %v523 = vld [vmem:[#allocation2] sm:$0xff]
        %v524 = vpack.c.bf16 %v522, %v522
        %v525 = vld [vmem:[%s297] sm:$0xf]
        %v526 = vld [vmem:[%s297 + $0x4] sm:$0xf]
        %v527 = vld [vmem:[%s297 + $0x8] sm:$0xf]
        %v528 = vld [vmem:[%s297 + $0xc] sm:$0xf]
        %v529 = vld [vmem:[%s297 + $0x10] sm:$0xf]
        %v530 = vld [vmem:[%s297 + $0x14] sm:$0xf]
        %v531 = vld [vmem:[%s297 + $0x18] sm:$0xf]
        %v532 = vld [vmem:[%s297 + $0x1c] sm:$0xf]
        %v533 = vld [vmem:[%s297 + $0x20] sm:$0xf]
        %v534 = vld [vmem:[%s297 + $0x24] sm:$0xf]
        %v535 = vld [vmem:[%s297 + $0x28] sm:$0xf]
        %v536 = vld [vmem:[%s297 + $0x2c] sm:$0xf]
        %v537 = vld [vmem:[%s297 + $0x30] sm:$0xf]
        %v538 = vld [vmem:[%s297 + $0x34] sm:$0xf]
        %v539 = vld [vmem:[%s297 + $0x38] sm:$0xf]
        %v540 = vld [vmem:[%s297 + $0x3c] sm:$0xf]
        %v557 = vunpack.c.l.b16 %v525
        %v558 = vunpack.c.l.b16 %v526
        %v559 = vunpack.c.l.b16 %v527
        %v560 = vunpack.c.l.b16 %v528
        %v561 = vunpack.c.l.b16 %v529
        %v562 = vunpack.c.l.b16 %v530
        %v563 = vunpack.c.l.b16 %v531
        %v564 = vunpack.c.l.b16 %v532
        %v565 = vunpack.c.l.b16 %v533
        %v566 = vunpack.c.l.b16 %v534
        %v567 = vunpack.c.l.b16 %v535
        %v568 = vunpack.c.l.b16 %v536
        %v569 = vunpack.c.l.b16 %v537
        %v570 = vunpack.c.l.b16 %v538
        %v571 = vunpack.c.l.b16 %v539
        %v572 = vunpack.c.l.b16 %v540
        %v573 = vpack.c.b16 %v558, %v557
        %v574 = vpack.c.b16 %v560, %v559
        %v575 = vpack.c.b16 %v562, %v561
        %v576 = vpack.c.b16 %v564, %v563
        %v577 = vpack.c.b16 %v566, %v565
        %v578 = vpack.c.b16 %v568, %v567
        %v579 = vpack.c.b16 %v570, %v569
        %v580 = vpack.c.b16 %v572, %v571
        %589 = vmatprep.subr.bf16.mxu0 0
        %590 = vmatpush1.bf16.msra.mxu0 %v580
        %591 = vmatprep.subr.bf16.mxu0 0
        %592 = vmatpush1.bf16.msra.mxu0 %v579
        %593 = vmatprep.subr.bf16.mxu0 0
        %594 = vmatpush1.bf16.msra.mxu0 %v578
        %595 = vmatprep.subr.bf16.mxu0 0
        %596 = vmatpush1.bf16.msra.mxu0 %v577
        %597 = vmatprep.subr.bf16.mxu0 0
        %598 = vmatpush1.bf16.msra.mxu0 %v576
        %599 = vmatprep.subr.bf16.mxu0 0
        %600 = vmatpush1.bf16.msra.mxu0 %v575
        %601 = vmatprep.subr.bf16.mxu0 0
        %602 = vmatpush1.bf16.msra.mxu0 %v574
        %603 = vmatprep.subr.bf16.mxu0 0
        %604 = vmatpush1.bf16.msra.mxu0 %v573
        %605 = vmatprep.subr.bf16.mxu0 0
        %606 = vmatpush2.bf16.msra.mxu0 0
        %607 = vmatprep.subr.bf16.mxu0 0
        %608 = vmatpush2.bf16.msra.mxu0 0
        %609 = vmatprep.subr.bf16.mxu0 0
        %610 = vmatpush2.bf16.msra.mxu0 0
        %611 = vmatprep.subr.bf16.mxu0 0
        %612 = vmatpush2.bf16.msra.mxu0 0
        %613 = vmatprep.subr.bf16.mxu0 0
        %614 = vmatpush2.bf16.msra.mxu0 0
        %615 = vmatprep.subr.bf16.mxu0 0
        %616 = vmatpush2.bf16.msra.mxu0 0
        %617 = vmatprep.subr.bf16.mxu0 0
        %618 = vmatpush2.bf16.msra.mxu0 0
        %619 = vmatprep.subr.bf16.mxu0 0
        %620 = vmatpush2.bf16.msra.mxu0 0
        %621 = vmatprep.mubr.bf16.mxu0 0
        %622 = vmatmul.mubr.bf16.gmra.mxu0 %v524
        %v623 = vpop.f32.mrf.mxu0
        %v624 = vadd.f32 0.0, %v623
        %v625 = vpop.f32.mrf.mxu0
        %v626 = vpop.f32.mrf.mxu0
        %v627 = vpop.f32.mrf.mxu0
        %628 = vdwg.mxu0
        %v629 = vadd.f32 %v523, %v624
        %630 = vst [vmem:[#allocation2] sm:$0xff] %v629
        // Predicated region
        $region57: #{tpu_custom_call.1} parent=39 // pred_check
          %p631 = pneg %p338
        $region58: #{tpu_custom_call.1} parent=39 // pred_check_branch
          %633 = sbr.rel (%p631) target = $region60
        $region59: #{tpu_custom_call.1} parent=39 // pred_region
          %v634 = vld [vmem:[#allocation2] sm:$0xff]
          %v635 = vld [vmem:[%s336] sm:$0x1]
          %v637 = vlaneseq
          %v638 = vshrl.u32 %v637, 7
          %v639 = vsub.s32 0, %v638
          %v640 = vrot.slane %v635, %v639
          %v642 = vadd.f32 %v634, %v640
          %v643 = vsub.f32 0.0, %v642
          %v644 = vmul.f32 %v643, 1.442695
          %v645 = vpow.pop %v644
          %v646 = vadd.f32 %v645, 1.0
          %v647 = vrcp.pop %v646
          %648 = vst [vmem:[%s329] sm:$0xff] %v647
        $region60: #{tpu_custom_call.1} parent=39 // pred_fallthru
          _
        %s649 = sand.u32 %s182, 1
        %s650 = scalar_lea.sflag [#allocation5], %s649
        %s651 = sand.u32 %s182, 1
        %s652 = smul.addr %s651, 8
        %s653 = scalar_lea.vmem [#allocation9], %s652
        // Predicated region
        $region61: #{tpu_custom_call.1} parent=39 // pred_check
          %p654 = pneg %p192
        $region62: #{tpu_custom_call.1} parent=39 // pred_check_branch
          %656 = sbr.rel (%p654) target = $region64
        $region63: #{tpu_custom_call.1} parent=39 // pred_region
          %s658 = ssub.s32 128, 128
          %659 = vsyncadd %s650, %s658
          %s660 = smul.addr %s26, 2
          %s661 = sadd.s32 %s27, %s660
          %s662 = smul.addr %s661, 128
          %s663 = scalar_lea.hbm %s5, %s662
          %s665 = sshll.u32 %s653, 4
          %s666 = int_to_ptr.vmem [resolvable:$true] %s665
          %668 = dma.vmem_to_hbm [thread:$0]  %s666, 128, %s663, %s650
        $region64: #{tpu_custom_call.1} parent=39 // pred_fallthru
          _
      $region40: #{tpu_custom_call.1} parent=5 // pred_fallthru
        _
      %p669 = scmp.le.s32.totalorder 2, %s16
      // Predicated region
      $region65: #{tpu_custom_call.1} parent=5 // pred_check
        %p670 = pneg %p669
      $region66: #{tpu_custom_call.1} parent=5 // pred_check_branch
        %672 = sbr.rel (%p670) target = $region68
      $region67: #{tpu_custom_call.1} parent=5 // pred_region
        %s673 = ssub.s32 %s16, 2
        // Predicated region
        $region69: #{tpu_custom_call.1} parent=67 // pred_check
          %p674 = pneg %p198
        $region70: #{tpu_custom_call.1} parent=67 // pred_check_branch
          %676 = sbr.rel (%p674) target = $region72
        $region71: #{tpu_custom_call.1} parent=67 // pred_region
          %s677 = sand.u32 %s183, 1
          %s678 = scalar_lea.sflag [#allocation5], %s677
          %s679 = sand.u32 %s183, 1
          %s680 = smul.addr %s679, 8
          %s681 = scalar_lea.vmem [#allocation9], %s680
          %682 = dma.done %s678, 128
        $region72: #{tpu_custom_call.1} parent=67 // pred_fallthru
          _
      $region68: #{tpu_custom_call.1} parent=5 // pred_fallthru
        _
    $region6: #{tpu_custom_call.1} parent=1 // loop_footer
      %s20 = sadd.s32 1, %s16
    $region7: #{tpu_custom_call.1} parent=1 // loop_footer_branch
      %15 = sbr.rel target = $region3
    $region8: #{tpu_custom_call.1} parent=1 // loop_exit
      _
    %683 = vsyncpa [#allocation4], 1
    %s684 = scalar_lea.sflag [#allocation4], 1
    %685 = vsyncpa %s684, 1
    %686 = vsyncpa [#allocation7], 1
    %687 = vsyncpa [#allocation5], 1
    %s688 = scalar_lea.sflag [#allocation5], 1
    %689 = vsyncpa %s688, 1

</llo_original>
